<compile_context>
chip_gen: v7x
topology: tpu7x:2x2x1
jax: 0.10.0
libtpu: 0.0.40
codegen_flags: <defaults>
</compile_context>

<pallas_src>
import functools

import jax
import jax.numpy as jnp
from jax.experimental import pallas as pl
from jax.experimental.pallas import tpu as pltpu

_MiB = 1024 * 1024


def _attention_kernel(use_mask, *refs):
    if use_mask:
        (wh_ref, bh_ref, wa_ref, ba_ref,
         h_ref, p_ref, feat_ref, mask_ref, out_ref) = refs
    else:
        (wh_ref, bh_ref, wa_ref, ba_ref,
         h_ref, p_ref, feat_ref, out_ref) = refs

    # h2att on the MXU in the input dtype, f32 accumulation: (TB,R) x (R,H)
    att_h = jnp.dot(h_ref[...], wh_ref[...],
                    preferred_element_type=jnp.float32)                  # (TB, H) f32
    att_h = att_h + bh_ref[...].astype(jnp.float32)                      # (TB, H)

    # tanh(p_att + att_h) in the p_att dtype (bf16 on v6e/v7x -> lighter EUP,
    # exact when inputs are f32).
    att = p_ref[...]                                                     # (TB, S, H)
    cdt = att.dtype
    dot = jnp.tanh(att + att_h[:, None, :].astype(cdt))                  # (TB, S, H)

    # alpha_net: contract H (lane axis) -> lane-dense scores (TB, S), f32.
    wa = wa_ref[...].astype(cdt)                                         # (1, H)
    scores = jnp.sum((dot * wa[None, :, :]).astype(jnp.float32), axis=-1)
    scores = scores + ba_ref[0, 0]                                       # (TB, S)

    # softmax over att_size (lane axis), fused with optional mask renorm:
    #   softmax(s)*m / sum(softmax(s)*m) == exp(s-max)*m / sum(exp(s-max)*m)
    m = jnp.max(scores, axis=-1, keepdims=True)                          # (TB, 1)
    e = jnp.exp(scores - m)                                              # (TB, S)
    if use_mask:
        e = e * mask_ref[...].astype(jnp.float32)
    denom = jnp.sum(e, axis=-1, keepdims=True)                           # (TB, 1)
    w = e * pl.reciprocal(denom, approx=False)                           # (TB, S)

    # weighted pooling as a batched MXU matmul with operands in the feats
    # dtype, f32 accumulation; squeeze to a dense (TB, D) output block.
    feats = feat_ref[...]                                                # (TB, S, D)
    res3 = jnp.einsum('bqs,bsd->bqd', w[:, None, :].astype(feats.dtype), feats,
                      preferred_element_type=jnp.float32)                # (TB, 1, D)
    out_ref[...] = res3[:, 0, :].astype(out_ref.dtype)                   # (TB, D)


def _vmem_budget():
    """Generation-aware VMEM sizing.

    Returns (tile_budget_bytes, vmem_limit_bytes, dual_core_hint).
    dual_core_hint is True for small-per-core-VMEM chips (v7x: 64 MiB/TC,
    2 TCs/chip) where we want >=2 grid steps on the parallel axis.
    """
    cap = 0
    try:
        info = pltpu.get_tpu_info()
        cap = int(getattr(info, "vmem_capacity_bytes", 0))
    except Exception:
        cap = 0
    if cap <= 0:
        # Unknown chip: conservative defaults valid everywhere.
        return 36 * _MiB, 48 * _MiB, False
    dual_core = cap <= 64 * _MiB
    budget = int(cap * 0.70)
    limit = int(cap * 0.85)
    return budget, limit, dual_core


def _pick_batch_tile(B, S, H, D, R, in_itemsize, out_itemsize, mask_itemsize,
                     budget_bytes, min_grid_steps=1):
    """Largest batch tile whose VMEM footprint (double-buffered DMA blocks plus
    in-kernel temporaries) fits the budget. Tiles smaller than B are aligned to
    8 sublanes (to 256 when large, so the h2att matmul fills the MXU rows)."""
    f32 = 4
    # Double-buffered per-row DMA blocks (input dtype) + output row.
    dma = 2 * (R * in_itemsize
               + S * H * in_itemsize
               + S * D * in_itemsize
               + S * mask_itemsize
               + D * out_itemsize)
    # In-kernel temporaries per row (conservative): tanh result and alpha
    # product in the compute dtype, one f32 copy of the (S,H) slab for the
    # H-reduction, scores/exp/weights rows in f32, pooled f32 result.
    tmp = (2 * S * H * in_itemsize
           + S * H * f32
           + 4 * S * f32
           + 2 * D * f32)
    per_row = dma + tmp
    params_bytes = 2 * (R * H + 2 * H + 1) * f32
    avail = max(budget_bytes - params_bytes, per_row)
    tb = avail // per_row
    if min_grid_steps > 1:
        tb = min(tb, -(-B // min_grid_steps))      # ceil(B / min_grid_steps)
    if tb >= B:
        return int(B)
    if tb >= 256:
        tb = (tb // 256) * 256
    else:
        tb = max(8, (tb // 8) * 8)
    return int(min(tb, B))


def attention_forward(params, h, att_feats, p_att_feats, att_masks=None):
    wh, bh, wa, ba = params
    B, R = h.shape
    D = att_feats.shape[-1]
    H = wh.shape[1]
    S = att_feats.size // B // D

    feats = att_feats.reshape(B, S, D)
    p_att = p_att_feats.reshape(B, S, H)
    out_dtype = att_feats.dtype
    use_mask = att_masks is not None

    in_itemsize = max(jnp.dtype(feats.dtype).itemsize,
                      jnp.dtype(p_att.dtype).itemsize)
    if use_mask:
        mask = att_masks.reshape(B, S)
        if mask.dtype == jnp.bool_:
            mask = mask.astype(feats.dtype)     # keep narrow dtypes, avoid bools
        mask_itemsize = jnp.dtype(mask.dtype).itemsize
    else:
        mask = None
        mask_itemsize = 0

    budget, vmem_limit, dual_core = _vmem_budget()
    min_steps = 2 if (dual_core and B >= 16) else 1
    TB = _pick_batch_tile(B, S, H, D, R, in_itemsize,
                          jnp.dtype(out_dtype).itemsize, mask_itemsize,
                          budget, min_steps)
    grid = (pl.cdiv(B, TB),)

    in_specs = [
        # parameters: whole-array blocks reused every grid step
        pl.BlockSpec((R, H), lambda b: (0, 0)),
        pl.BlockSpec((1, H), lambda b: (0, 0)),
        pl.BlockSpec((1, H), lambda b: (0, 0)),
        pl.BlockSpec(memory_space=pltpu.MemorySpace.SMEM),   # ba scalar
        # per-batch-tile tensors
        pl.BlockSpec((TB, R), lambda b: (b, 0)),
        pl.BlockSpec((TB, S, H), lambda b: (b, 0, 0)),
        pl.BlockSpec((TB, S, D), lambda b: (b, 0, 0)),
    ]
    inputs = [wh, bh, wa, ba, h, p_att, feats]
    if use_mask:
        in_specs.append(pl.BlockSpec((TB, S), lambda b: (b, 0)))
        inputs.append(mask)

    flops = 2 * B * (R * H + S * H + S * D)
    transcendentals = B * S * (H + 1)                        # tanh + exp
    bytes_accessed = (
        h.size * jnp.dtype(h.dtype).itemsize
        + p_att.size * jnp.dtype(p_att.dtype).itemsize
        + feats.size * jnp.dtype(feats.dtype).itemsize
        + B * D * jnp.dtype(out_dtype).itemsize
        + (wh.size + bh.size + wa.size + ba.size) * 4
        + (B * S * mask_itemsize if use_mask else 0))

    out = pl.pallas_call(
        functools.partial(_attention_kernel, use_mask),
        out_shape=jax.ShapeDtypeStruct((B, D), out_dtype),
        grid=grid,
        in_specs=in_specs,
        out_specs=pl.BlockSpec((TB, D), lambda b: (b, 0)),
        compiler_params=pltpu.CompilerParams(
            dimension_semantics=("parallel",),
            vmem_limit_bytes=int(vmem_limit)),
        cost_estimate=pl.CostEstimate(
            flops=flops,
            transcendentals=transcendentals,
            bytes_accessed=bytes_accessed),
    )(*inputs)
    return out                                  # (B, D)


def attention_ref(params, h, att_feats, p_att_feats, att_masks=None):
    """Pure-JAX reference matching the PyTorch forward."""
    wh, bh, wa, ba = params
    B = h.shape[0]
    D = att_feats.shape[-1]
    H = wh.shape[1]
    S = att_feats.size // B // D
    att = p_att_feats.reshape(B, S, H)
    att_h = h @ wh + bh                                   # (B, H)
    dot = jnp.tanh(att + att_h[:, None, :])               # (B, S, H)
    scores = jnp.einsum('bsh,h->bs', dot, wa[0]) + ba[0, 0]
    weight = jax.nn.softmax(scores, axis=1)
    if att_masks is not None:
        weight = weight * att_masks.reshape(B, S).astype(jnp.float32)
        weight = weight / weight.sum(1, keepdims=True)
    feats = att_feats.reshape(B, S, D)
    return jnp.einsum('bs,bsd->bd', weight, feats)


def init_params(key, rnn_size, att_hid_size):
    """Deterministic Xavier-normal weights, zero biases (as in init_weight)."""
    k1, k2 = jax.random.split(key)
    std_h = (2.0 / (rnn_size + att_hid_size)) ** 0.5
    wh = jax.random.normal(k1, (rnn_size, att_hid_size), jnp.float32) * std_h
    bh = jnp.zeros((1, att_hid_size), jnp.float32)
    std_a = (2.0 / (att_hid_size + 1)) ** 0.5
    wa = jax.random.normal(k2, (1, att_hid_size), jnp.float32) * std_a
    ba = jnp.zeros((1, 1), jnp.float32)
    return wh, bh, wa, ba


if __name__ == "__main__":
    B, R, H, S, D = 2, 32, 32, 8, 32   # batch, rnn_size, att_hid_size, att_size, feat_dim

    key = jax.random.PRNGKey(0)
    kp, kh, kf, kpf = jax.random.split(key, 4)
    params = init_params(kp, R, H)

    h = jax.random.normal(kh, (B, R), jnp.float32)
    att_feats = jax.random.normal(kf, (B, S, D), jnp.float32)
    p_att_feats = jax.random.normal(kpf, (B, S, H), jnp.float32)
    lens = jnp.array([S, 5])
    att_masks = (jnp.arange(S)[None, :] < lens[:, None]).astype(jnp.float32)

    # no-mask path
    out_nm = jax.block_until_ready(
        attention_forward(params, h, att_feats, p_att_feats, None))
    ref_nm = attention_ref(params, h, att_feats, p_att_feats, None)

    # masked path
    out_m = jax.block_until_ready(
        attention_forward(params, h, att_feats, p_att_feats, att_masks))
    ref_m = attention_ref(params, h, att_feats, p_att_feats, att_masks)

    assert out_nm.shape == (B, D) and out_m.shape == (B, D)
    assert jnp.allclose(out_nm, ref_nm, atol=1e-4, rtol=1e-4), "no-mask mismatch"
    assert jnp.allclose(out_m, ref_m, atol=1e-4, rtol=1e-4), "masked mismatch"

    print("KERNEL_OK")
</pallas_src>

<mosaic_0001>
module attributes {stable_mosaic.version = 11 : i64} {
  func.func @_attention_kernel(%arg0: i32, %arg1: memref<32x32xf32, #tpu.memory_space<vmem>>, %arg2: memref<1x32xf32, #tpu.memory_space<vmem>>, %arg3: memref<1x32xf32, #tpu.memory_space<vmem>>, %arg4: memref<1x1xf32, #tpu.memory_space<smem>>, %arg5: memref<2x32xf32, #tpu.memory_space<vmem>>, %arg6: memref<2x8x32xf32, #tpu.memory_space<vmem>>, %arg7: memref<2x8x32xf32, #tpu.memory_space<vmem>>, %arg8: memref<2x32xf32, #tpu.memory_space<vmem>>) attributes {dimension_semantics = [#tpu.dimension_semantics<parallel>], iteration_bounds = array<i64: 1>, scalar_prefetch = 0 : i64, scratch_operands = 0 : i64, tpu.core_type = #tpu.core_type<tc>, window_params = [{pipeline_mode = #tpu.pipeline_mode<synchronous>, transform_indices = @transform_0, window_bounds = array<i64: 32, 32>}, {pipeline_mode = #tpu.pipeline_mode<synchronous>, transform_indices = @transform_1, window_bounds = array<i64: 1, 32>}, {pipeline_mode = #tpu.pipeline_mode<synchronous>, transform_indices = @transform_2, window_bounds = array<i64: 1, 32>}, {transform_indices = @transform_3, window_bounds = array<i64: 1, 1>}, {transform_indices = @transform_4, window_bounds = array<i64: 2, 32>}, {transform_indices = @transform_5, window_bounds = array<i64: 2, 8, 32>}, {transform_indices = @transform_6, window_bounds = array<i64: 2, 8, 32>}, {transform_indices = @transform_7, window_bounds = array<i64: 2, 32>}]} {
    %c0 = arith.constant 0 : index
    %c0_0 = arith.constant 0 : index
    %0 = vector.load %arg5[%c0, %c0_0] : memref<2x32xf32, #tpu.memory_space<vmem>>, vector<2x32xf32>
    %c0_1 = arith.constant 0 : index
    %c0_2 = arith.constant 0 : index
    %1 = vector.load %arg1[%c0_1, %c0_2] : memref<32x32xf32, #tpu.memory_space<vmem>>, vector<32x32xf32>
    %cst = arith.constant dense<0.000000e+00> : vector<2x32xf32>
    %2 = tpu.matmul %0, %1, %cst {dimension_numbers = #tpu.dot_dimension_numbers<[1], [0], [0], [1], [0, 0, 1, 1], [], []>} : vector<2x32xf32>, vector<32x32xf32>, vector<2x32xf32> -> vector<2x32xf32>
    %c0_3 = arith.constant 0 : index
    %c0_4 = arith.constant 0 : index
    %3 = vector.load %arg2[%c0_3, %c0_4] : memref<1x32xf32, #tpu.memory_space<vmem>>, vector<1x32xf32>
    %4 = vector.broadcast %3 : vector<1x32xf32> to vector<2x32xf32>
    %5 = arith.addf %2, %4 : vector<2x32xf32>
    %c0_5 = arith.constant 0 : index
    %c0_6 = arith.constant 0 : index
    %c0_7 = arith.constant 0 : index
    %6 = vector.load %arg6[%c0_5, %c0_6, %c0_7] : memref<2x8x32xf32, #tpu.memory_space<vmem>>, vector<2x8x32xf32>
    %7 = vector.shape_cast %5 : vector<2x32xf32> to vector<2x1x32xf32>
    %8 = vector.broadcast %7 : vector<2x1x32xf32> to vector<2x8x32xf32>
    %9 = arith.addf %6, %8 : vector<2x8x32xf32>
    %10 = math.tanh %9 : vector<2x8x32xf32>
    %c0_8 = arith.constant 0 : index
    %c0_9 = arith.constant 0 : index
    %11 = vector.load %arg3[%c0_8, %c0_9] : memref<1x32xf32, #tpu.memory_space<vmem>>, vector<1x32xf32>
    %12 = vector.shape_cast %11 : vector<1x32xf32> to vector<1x1x32xf32>
    %13 = vector.broadcast %12 : vector<1x1x32xf32> to vector<2x8x32xf32>
    %14 = arith.mulf %10, %13 : vector<2x8x32xf32>
    %cst_10 = arith.constant dense<0.000000e+00> : vector<2x8xf32>
    %15 = vector.multi_reduction <add>, %14, %cst_10 [2] : vector<2x8x32xf32> to vector<2x8xf32>
    %c0_11 = arith.constant 0 : index
    %c0_12 = arith.constant 0 : index
    %16 = memref.load %arg4[%c0_11, %c0_12] : memref<1x1xf32, #tpu.memory_space<smem>>
    %17 = vector.broadcast %16 : f32 to vector<2x8xf32>
    %18 = arith.addf %15, %17 : vector<2x8xf32>
    %cst_13 = arith.constant dense<0xFF800000> : vector<2xf32>
    %19 = vector.multi_reduction <maximumf>, %18, %cst_13 [1] : vector<2x8xf32> to vector<2xf32>
    %20 = vector.shape_cast %19 : vector<2xf32> to vector<2x1xf32>
    %21 = vector.broadcast %20 : vector<2x1xf32> to vector<2x8xf32>
    %22 = arith.subf %18, %21 : vector<2x8xf32>
    %23 = math.exp %22 : vector<2x8xf32>
    %cst_14 = arith.constant dense<0.000000e+00> : vector<2xf32>
    %24 = vector.multi_reduction <add>, %23, %cst_14 [1] : vector<2x8xf32> to vector<2xf32>
    %25 = vector.shape_cast %24 : vector<2xf32> to vector<2x1xf32>
    %26 = tpu.reciprocal %25 : vector<2x1xf32> -> vector<2x1xf32>
    %27 = vector.broadcast %26 : vector<2x1xf32> to vector<2x8xf32>
    %28 = arith.mulf %23, %27 : vector<2x8xf32>
    %c0_15 = arith.constant 0 : index
    %c0_16 = arith.constant 0 : index
    %c0_17 = arith.constant 0 : index
    %29 = vector.load %arg7[%c0_15, %c0_16, %c0_17] : memref<2x8x32xf32, #tpu.memory_space<vmem>>, vector<2x8x32xf32>
    %30 = vector.shape_cast %28 : vector<2x8xf32> to vector<2x1x8xf32>
    "tpu.trace_start"() <{level = 10 : i32, message = "bqs,bsd->bqd"}> : () -> ()
    %cst_18 = arith.constant dense<0.000000e+00> : vector<2x1x32xf32>
    %31 = tpu.matmul %30, %29, %cst_18 {dimension_numbers = #tpu.dot_dimension_numbers<[2], [1], [1], [2], [0, 0, 0, 1, 1, 2], [0], [0]>} : vector<2x1x8xf32>, vector<2x8x32xf32>, vector<2x1x32xf32> -> vector<2x1x32xf32>
    "tpu.trace_stop"() : () -> ()
    %32 = vector.shape_cast %31 : vector<2x1x32xf32> to vector<2x32xf32>
    %c0_19 = arith.constant 0 : index
    %c0_20 = arith.constant 0 : index
    %33 = vector.load %arg8[%c0_19, %c0_20] : memref<2x32xf32, #tpu.memory_space<vmem>>, vector<2x32xf32>
    tpu.vector_store %arg8[%c0_19, %c0_20], %32 {strides = array<i32>} : memref<2x32xf32, #tpu.memory_space<vmem>>, vector<2x32xf32>,
    return
  }
  func.func @transform_0(%arg0: i32) -> (i32, i32) {
    %c0_i32 = arith.constant 0 : i32
    %c0_i32_0 = arith.constant 0 : i32
    %c0_i32_1 = arith.constant 0 : i32
    return %c0_i32, %c0_i32_0 : i32, i32
  }
  func.func @transform_1(%arg0: i32) -> (i32, i32) {
    %c0_i32 = arith.constant 0 : i32
    %c0_i32_0 = arith.constant 0 : i32
    %c0_i32_1 = arith.constant 0 : i32
    return %c0_i32, %c0_i32_0 : i32, i32
  }
  func.func @transform_2(%arg0: i32) -> (i32, i32) {
    %c0_i32 = arith.constant 0 : i32
    %c0_i32_0 = arith.constant 0 : i32
    %c0_i32_1 = arith.constant 0 : i32
    return %c0_i32, %c0_i32_0 : i32, i32
  }
  func.func @transform_3(%arg0: i32) -> (i32, i32) {
    %c0_i32 = arith.constant 0 : i32
    %c0_i32_0 = arith.constant 0 : i32
    %c0_i32_1 = arith.constant 0 : i32
    return %c0_i32, %c0_i32_0 : i32, i32
  }
  func.func @transform_4(%arg0: i32) -> (i32, i32) {
    %c0_i32 = arith.constant 0 : i32
    %c0_i32_0 = arith.constant 0 : i32
    return %arg0, %c0_i32 : i32, i32
  }
  func.func @transform_5(%arg0: i32) -> (i32, i32, i32) {
    %c0_i32 = arith.constant 0 : i32
    %c0_i32_0 = arith.constant 0 : i32
    %c0_i32_1 = arith.constant 0 : i32
    return %arg0, %c0_i32, %c0_i32_0 : i32, i32, i32
  }
  func.func @transform_6(%arg0: i32) -> (i32, i32, i32) {
    %c0_i32 = arith.constant 0 : i32
    %c0_i32_0 = arith.constant 0 : i32
    %c0_i32_1 = arith.constant 0 : i32
    return %arg0, %c0_i32, %c0_i32_0 : i32, i32, i32
  }
  func.func @transform_7(%arg0: i32) -> (i32, i32) {
    %c0_i32 = arith.constant 0 : i32
    %c0_i32_0 = arith.constant 0 : i32
    return %arg0, %c0_i32 : i32, i32
  }
}

</mosaic_0001>

<llo_original>
// kernel: tpu_custom_call.1
$region0: #{tpu_custom_call.1}
  #allocation0 [shape = 'u32[]', space=smem, size = 0x4, offset = 0x4, fixed_abs, tag = 'smem constant byte address 0x4 - core index']
  #allocation1 [shape = 'u32[144,128]{1,0:T(1,128)}', space=vmem, size = 0x12000, scoped, tag = 'internal scratch']
  #allocation2 [shape = 'f32[1,1]{1,0:T(1,128)S(6)}', space=smem, size = 0x200, scoped, tag = 'scoped memory for tpu_custom_call.1']
  %s0 = inlined_call_operand.hbm [shape: f32[32,32], index: 0, kind: input, shape index: {}]
  %s1 = inlined_call_operand.hbm [shape: f32[1,32], index: 1, kind: input, shape index: {}]
  %s2 = inlined_call_operand.hbm [shape: f32[1,32], index: 2, kind: input, shape index: {}]
  %s3 = inlined_call_operand.<no memory space> [shape: f32[1,1], index: 3, kind: input, shape index: {}]
  %s4 = inlined_call_operand.vmem [shape: f32[2,32], index: 4, kind: input, shape index: {}]
  %s5 = inlined_call_operand.vmem [shape: f32[2,8,32], index: 5, kind: input, shape index: {}]
  %s6 = inlined_call_operand.hbm [shape: f32[2,8,32], index: 6, kind: input, shape index: {}]
  %s7 = inlined_call_operand.hbm [shape: f32[2,32], index: 7, kind: output, shape index: {}]
  %s8 = sld [smem:[#allocation0]]
  $region54: #{tpu_custom_call.1} parent=0
    _
  %s10 = ssub.s32 1, %s8
  %s11 = scalar_select 0, %s10, %s8
  %12 = sst [smem:[#allocation2]] %s3
  $region1: #{tpu_custom_call.1} parent=0
    #allocation3 [shape = 'u8[16384]{0}', space=vmem, size = 0x4000, scoped, tag = 'input window, operand 0, single buffered']
    #allocation4 [shape = 's32[1]{0}', space=sflag, size = 0x4, scoped, tag = 'scoped memory for tpu_custom_call.1']
    #allocation5 [shape = 's32[1]{0}', space=sflag, size = 0x4, scoped, tag = 'scoped memory for tpu_custom_call.1']
    #allocation6 [shape = 'u8[512]{0}', space=vmem, size = 0x400, scoped, tag = 'input window, operand 1, single buffered']
    #allocation7 [shape = 's32[1]{0}', space=sflag, size = 0x4, scoped, tag = 'scoped memory for tpu_custom_call.1']
    #allocation8 [shape = 'u8[512]{0}', space=vmem, size = 0x400, scoped, tag = 'input window, operand 2, single buffered']
    #allocation9 [shape = 'u8[8192]{0}', space=vmem, size = 0x2000, scoped, tag = 'input window, operand 6, single buffered']
    #allocation10 [shape = 's32[1]{0}', space=sflag, size = 0x4, scoped, tag = 'scoped memory for tpu_custom_call.1']
    #allocation11 [shape = 'u8[1024]{0}', space=vmem, size = 0x400, scoped, tag = 'output window, operand 0, single buffered']
    %13 = vsyncpa [#allocation4], 0
    %14 = vsyncpa [#allocation7], 0
    %15 = vsyncpa [#allocation10], 0
    %16 = vsyncpa [#allocation5], 0
    // Predicated region
    $region2: #{tpu_custom_call.1} parent=1 // pred_check
      _
    $region3: #{tpu_custom_call.1} parent=1 // pred_check_branch
      %18 = sbr.rel (0) target = $region5
    $region4: #{tpu_custom_call.1} parent=1 // pred_region
      %s20 = ssub.s32 512, 512
      %21 = vsyncadd [#allocation4], %s20
      %s22 = sshll.u32 [#allocation3], 4
      %s23 = int_to_ptr.vmem [resolvable:$true] %s22
      %28 = dma.hbm_to_vmem [thread:$0]  %s0, 512, %s23, [#allocation4], 128, 128, 8
    $region5: #{tpu_custom_call.1} parent=1 // pred_fallthru
      _
    // Predicated region
    $region6: #{tpu_custom_call.1} parent=1 // pred_check
      _
    $region7: #{tpu_custom_call.1} parent=1 // pred_check_branch
      %30 = sbr.rel (0) target = $region9
    $region8: #{tpu_custom_call.1} parent=1 // pred_region
      %s32 = ssub.s32 16, 16
      %33 = vsyncadd [#allocation7], %s32
      %s35 = sshll.u32 [#allocation6], 4
      %s36 = int_to_ptr.vmem [resolvable:$true] %s35
      %38 = dma.hbm_to_vmem [thread:$0]  %s1, 16, %s36, [#allocation7]
    $region9: #{tpu_custom_call.1} parent=1 // pred_fallthru
      _
    // Predicated region
    $region10: #{tpu_custom_call.1} parent=1 // pred_check
      _
    $region11: #{tpu_custom_call.1} parent=1 // pred_check_branch
      %40 = sbr.rel (0) target = $region13
    $region12: #{tpu_custom_call.1} parent=1 // pred_region
      %s42 = ssub.s32 16, 16
      %43 = vsyncadd [#allocation7], %s42
      %s45 = sshll.u32 [#allocation8], 4
      %s46 = int_to_ptr.vmem [resolvable:$true] %s45
      %48 = dma.hbm_to_vmem [thread:$0]  %s2, 16, %s46, [#allocation7]
    $region13: #{tpu_custom_call.1} parent=1 // pred_fallthru
      _
    // Predicated region
    $region14: #{tpu_custom_call.1} parent=1 // pred_check
      _
    $region15: #{tpu_custom_call.1} parent=1 // pred_check_branch
      %50 = sbr.rel (0) target = $region17
    $region16: #{tpu_custom_call.1} parent=1 // pred_region
      _
    $region17: #{tpu_custom_call.1} parent=1 // pred_fallthru
      _
    // Predicated region
    $region18: #{tpu_custom_call.1} parent=1 // pred_check
      _
    $region19: #{tpu_custom_call.1} parent=1 // pred_check_branch
      %52 = sbr.rel (0) target = $region21
    $region20: #{tpu_custom_call.1} parent=1 // pred_region
      _
    $region21: #{tpu_custom_call.1} parent=1 // pred_fallthru
      _
    // Predicated region
    $region22: #{tpu_custom_call.1} parent=1 // pred_check
      _
    $region23: #{tpu_custom_call.1} parent=1 // pred_check_branch
      %54 = sbr.rel (0) target = $region25
    $region24: #{tpu_custom_call.1} parent=1 // pred_region
      _
    $region25: #{tpu_custom_call.1} parent=1 // pred_fallthru
      _
    // Predicated region
    $region26: #{tpu_custom_call.1} parent=1 // pred_check
      _
    $region27: #{tpu_custom_call.1} parent=1 // pred_check_branch
      %56 = sbr.rel (0) target = $region29
    $region28: #{tpu_custom_call.1} parent=1 // pred_region
      %s58 = ssub.s32 256, 256
      %59 = vsyncadd [#allocation10], %s58
      %s60 = sshll.u32 [#allocation9], 4
      %s61 = int_to_ptr.vmem [resolvable:$true] %s60
      %66 = dma.hbm_to_vmem [thread:$0]  %s6, 256, %s61, [#allocation10], 128, 128, 8
    $region29: #{tpu_custom_call.1} parent=1 // pred_fallthru
      _
    // Predicated region
    $region30: #{tpu_custom_call.1} parent=1 // pred_check
      _
    $region31: #{tpu_custom_call.1} parent=1 // pred_check_branch
      %68 = sbr.rel (0) target = $region33
    $region32: #{tpu_custom_call.1} parent=1 // pred_region
      %69 = dma.done [#allocation4], 512
    $region33: #{tpu_custom_call.1} parent=1 // pred_fallthru
      _
    // Predicated region
    $region34: #{tpu_custom_call.1} parent=1 // pred_check
      _
    $region35: #{tpu_custom_call.1} parent=1 // pred_check_branch
      %71 = sbr.rel (0) target = $region37
    $region36: #{tpu_custom_call.1} parent=1 // pred_region
      %72 = dma.done [#allocation7], 16
    $region37: #{tpu_custom_call.1} parent=1 // pred_fallthru
      _
    // Predicated region
    $region38: #{tpu_custom_call.1} parent=1 // pred_check
      _
    $region39: #{tpu_custom_call.1} parent=1 // pred_check_branch
      %74 = sbr.rel (0) target = $region41
    $region40: #{tpu_custom_call.1} parent=1 // pred_region
      %75 = dma.done [#allocation7], 16
    $region41: #{tpu_custom_call.1} parent=1 // pred_fallthru
      _
    // Predicated region
    $region42: #{tpu_custom_call.1} parent=1 // pred_check
      _
    $region43: #{tpu_custom_call.1} parent=1 // pred_check_branch
      %77 = sbr.rel (0) target = $region45
    $region44: #{tpu_custom_call.1} parent=1 // pred_region
      %78 = dma.done [#allocation10], 256
    $region45: #{tpu_custom_call.1} parent=1 // pred_fallthru
      _
    %v79 = vld [vmem:[%s4] sm:$0x3]
    %v80 = vld [vmem:[#allocation3] sm:$0xff]
    %v81 = vld [vmem:[#allocation3 + $0x8] sm:$0xff]
    %v82 = vld [vmem:[#allocation3 + $0x10] sm:$0xff]
    %v83 = vld [vmem:[#allocation3 + $0x18] sm:$0xff]
    %v84 = vld [vmem:[#allocation6] sm:$0x1]
    %v86 = vlaneseq
    %v87 = vshrl.u32 %v86, 7
    %v88 = vsub.s32 0, %v87
    %v89 = vrot.slane %v84, %v88
    %vm91 = vcmask 261120
    %v93 = vsel %vm91, %v79, 0
    %95 = vmatprep.subr.mxu0 0.0
    %96 = vmatpush1.msra.mxu0 %v80
    %97 = vmatprep.subr.mxu0 0.0
    %98 = vmatpush1.msra.mxu0 %v81
    %99 = vmatprep.subr.mxu0 0.0
    %100 = vmatpush1.msra.mxu0 %v82
    %101 = vmatprep.subr.mxu0 0.0
    %102 = vmatpush1.msra.mxu0 %v83
    %103 = vmatprep.subr.mxu0 0.0
    %104 = vmatpush1.msra.mxu0 0.0
    %105 = vmatprep.subr.mxu0 0.0
    %106 = vmatpush1.msra.mxu0 0.0
    %107 = vmatprep.subr.mxu0 0.0
    %108 = vmatpush1.msra.mxu0 0.0
    %109 = vmatprep.subr.mxu0 0.0
    %110 = vmatpush1.msra.mxu0 0.0
    %111 = vmatprep.subr.mxu0 0.0
    %112 = vmatpush1.msra.mxu0 0.0
    %113 = vmatprep.subr.mxu0 0.0
    %114 = vmatpush1.msra.mxu0 0.0
    %115 = vmatprep.subr.mxu0 0.0
    %116 = vmatpush1.msra.mxu0 0.0
    %117 = vmatprep.subr.mxu0 0.0
    %118 = vmatpush1.msra.mxu0 0.0
    %119 = vmatprep.subr.mxu0 0.0
    %120 = vmatpush1.msra.mxu0 0.0
    %121 = vmatprep.subr.mxu0 0.0
    %122 = vmatpush1.msra.mxu0 0.0
    %123 = vmatprep.subr.mxu0 0.0
    %124 = vmatpush1.msra.mxu0 0.0
    %125 = vmatprep.subr.mxu0 0.0
    %126 = vmatpush1.msra.mxu0 0.0
    %127 = vmatprep.subr.mxu0 0.0
    %128 = vmatpush1.msra.mxu0 0.0
    %129 = vmatprep.subr.mxu0 0.0
    %130 = vmatpush1.msra.mxu0 0.0
    %131 = vmatprep.subr.mxu0 0.0
    %132 = vmatpush1.msra.mxu0 0.0
    %133 = vmatprep.subr.mxu0 0.0
    %134 = vmatpush1.msra.mxu0 0.0
    %135 = vmatprep.subr.mxu0 0.0
    %136 = vmatpush1.msra.mxu0 0.0
    %137 = vmatprep.subr.mxu0 0.0
    %138 = vmatpush1.msra.mxu0 0.0
    %139 = vmatprep.subr.mxu0 0.0
    %140 = vmatpush1.msra.mxu0 0.0
    %141 = vmatprep.subr.mxu0 0.0
    %142 = vmatpush1.msra.mxu0 0.0
    %143 = vmatprep.subr.mxu0 0.0
    %144 = vmatpush1.msra.mxu0 0.0
    %145 = vmatprep.subr.mxu0 0.0
    %146 = vmatpush1.msra.mxu0 0.0
    %147 = vmatprep.subr.mxu0 0.0
    %148 = vmatpush1.msra.mxu0 0.0
    %149 = vmatprep.subr.mxu0 0.0
    %150 = vmatpush1.msra.mxu0 0.0
    %151 = vmatprep.subr.mxu0 0.0
    %152 = vmatpush1.msra.mxu0 0.0
    %153 = vmatprep.subr.mxu0 0.0
    %154 = vmatpush1.msra.mxu0 0.0
    %155 = vmatprep.subr.mxu0 0.0
    %156 = vmatpush1.msra.mxu0 0.0
    %157 = vmatprep.subr.mxu0 0.0
    %158 = vmatpush1.msra.mxu0 0.0
    %159 = vmatprep.mubr.f32.mxu0 0.0
    %160 = vmatmul.mubr.f32.gmra.mrb[0].mxu0 %v93
    %v161 = vpop.f32.mrb[0].mxu0
    %v162 = vadd.f32 %v89, %v161
    %v163 = vpop.f32.mrb[0].mxu0
    %164 = vdwg.mxu0
    %v165 = vld [vmem:[%s5] sm:$0xff]
    %v166 = vld [vmem:[%s5 + $0x8] sm:$0xff]
    %v169 = vunpack.c.l.s4 1966171168
    %v170 = vunpack.c.0.s8 %v169
    %v171 = vlaneseq
    %v172 = vshrl.u32 %v171, 7
    %v173 = vsub.s32 %v170, %v172
    %v174 = vrot.slane %v162, %v173
    %v175 = vcombine.high %v174, %v174
    %v177 = vunpack.c.l.s4 1966171168
    %v178 = vunpack.c.0.s8 %v177
    %v179 = vlaneseq
    %v180 = vshrl.u32 %v179, 7
    %v181 = vsub.s32 %v178, %v180
    %v182 = vrot.slane %v174, %v181
    %v184 = vunpack.c.l.s4 1966171168
    %v185 = vunpack.c.0.s8 %v184
    %v186 = vlaneseq
    %v187 = vshrl.u32 %v186, 7
    %v188 = vsub.s32 %v185, %v187
    %v189 = vrot.slane %v175, %v188
    %v190 = vlaneseq
    %v191 = vshrl.u32 %v190, 7
    %v192 = vsub.s32 0, %v191
    %v193 = vrot.slane %v182, %v192
    %v194 = vlaneseq
    %v195 = vshrl.u32 %v194, 7
    %v196 = vsub.s32 0, %v195
    %v197 = vrot.slane %v189, %v196
    %v200 = vadd.f32 %v165, %v193
    %v201 = vadd.f32 %v166, %v197
    %v202 = vtanh.pop %v200
    %v203 = vtanh.pop %v201
    %v204 = vld [vmem:[#allocation8] sm:$0x1]
    %v206 = vlaneseq
    %v207 = vshrl.u32 %v206, 7
    %v208 = vsub.s32 0, %v207
    %v209 = vrot.slane %v204, %v208
    %v211 = vmul.f32 %v202, %v209
    %v212 = vmul.f32 %v203, %v209
    %v213 = vsel %vm91, %v211, 0.0
    %214 = vadd.xlane.f32.xlu0 %v213
    %v215 = vpop.xlane.xlu0 %214
    %v216 = vsel %vm91, %v212, 0.0
    %217 = vadd.xlane.f32.xlu0 %v216
    %v218 = vpop.xlane.xlu0 %217
    %s219 = sld [smem:[#allocation2]]
    %v220 = vstv %s219
    %v221 = vadd.f32 %v215, %v220
    %v222 = vadd.f32 %v218, %v220
    %v225 = vlaneseq
    %v226 = vand.u32 %v225, 127
    %v227 = vlaneseq
    %v228 = vshrl.u32 %v227, 7
    %v229 = vsub.s32 %v226, %v228
    %v230 = vrot.slane %v221, %v229
    %v231 = vlaneseq
    %v232 = vshrl.u32 %v231, 7
    %v233 = vsub.s32 %v226, %v232
    %v234 = vrot.slane %v222, %v233
    %vm235 = vcmask 1041409
    %v236 = vsel %vm235, %v234, %v230
    %vm238 = vcmask 58368
    %v239 = vsel %vm238, %v236, -inf
    %240 = vmax.xlane.f32.xlu0 %v239
    %v241 = vpop.xlane.xlu0 %240
    %v243 = vlaneseq
    %v244 = vshrl.u32 %v243, 7
    %v245 = vsub.s32 0, %v244
    %v246 = vrot.slane %v241, %v245
    %v247 = vlaneseq
    %v248 = vshrl.u32 %v247, 7
    %v249 = vsub.s32 1, %v248
    %v250 = vrot.slane %v241, %v249
    %v253 = vsub.f32 %v221, %v246
    %v254 = vsub.f32 %v222, %v250
    %v255 = vmul.f32 %v253, 1.442695
    %v256 = vpow.pop %v255
    %v257 = vmul.f32 %v254, 1.442695
    %v258 = vpow.pop %v257
    %261 = vset.pattern.permute.xlu0 0
    %262 = vperm.xlu0 %261, %v256
    %v263 = vpop.permute.xlu0 %262
    %264 = vset.pattern.permute.xlu0 0
    %265 = vperm.xlu0 %264, %v258
    %v266 = vpop.permute.xlu0 %265
    %v267 = vlaneseq
    %v268 = vshrl.u32 %v267, 7
    %v269 = vsub.s32 %v226, %v268
    %v270 = vrot.slane %v263, %v269
    %v271 = vlaneseq
    %v272 = vshrl.u32 %v271, 7
    %v273 = vsub.s32 %v226, %v272
    %v274 = vrot.slane %v266, %v273
    %v275 = vsel %vm235, %v274, %v270
    %v277 = vsel %vm238, %v275, 0.0
    %278 = vadd.xlane.f32.xlu0 %v277
    %v279 = vpop.xlane.xlu0 %278
    %v280 = vrcp.pop %v279
    %v282 = vlaneseq
    %v283 = vshrl.u32 %v282, 7
    %v284 = vsub.s32 0, %v283
    %v285 = vrot.slane %v280, %v284
    %v286 = vlaneseq
    %v287 = vshrl.u32 %v286, 7
    %v288 = vsub.s32 1, %v287
    %v289 = vrot.slane %v280, %v288
    %v292 = vmul.f32 %v256, %v285
    %v293 = vmul.f32 %v258, %v289
    %v294 = vld [vmem:[#allocation9] sm:$0xff]
    %v295 = vld [vmem:[#allocation9 + $0x8] sm:$0xff]
    %297 = vset.pattern.permute.xlu0 0
    %298 = vperm.xlu0 %297, %v292
    %v299 = vpop.permute.xlu0 %298
    %v300 = vlaneseq
    %v301 = vshrl.u32 %v300, 7
    %v302 = vsub.s32 %v226, %v301
    %v303 = vrot.slane %v299, %v302
    %vm304 = vcmask 64512
    %v305 = vsel %vm304, %v303, 0
    %307 = vmatprep.subr.mxu0 0.0
    %308 = vmatpush1.msra.mxu0 %v294
    %309 = vmatprep.subr.mxu0 0.0
    %310 = vmatpush1.msra.mxu0 0.0
    %311 = vmatprep.subr.mxu0 0.0
    %312 = vmatpush1.msra.mxu0 0.0
    %313 = vmatprep.subr.mxu0 0.0
    %314 = vmatpush1.msra.mxu0 0.0
    %315 = vmatprep.subr.mxu0 0.0
    %316 = vmatpush1.msra.mxu0 0.0
    %317 = vmatprep.subr.mxu0 0.0
    %318 = vmatpush1.msra.mxu0 0.0
    %319 = vmatprep.subr.mxu0 0.0
    %320 = vmatpush1.msra.mxu0 0.0
    %321 = vmatprep.subr.mxu0 0.0
    %322 = vmatpush1.msra.mxu0 0.0
    %323 = vmatprep.subr.mxu0 0.0
    %324 = vmatpush1.msra.mxu0 0.0
    %325 = vmatprep.subr.mxu0 0.0
    %326 = vmatpush1.msra.mxu0 0.0
    %327 = vmatprep.subr.mxu0 0.0
    %328 = vmatpush1.msra.mxu0 0.0
    %329 = vmatprep.subr.mxu0 0.0
    %330 = vmatpush1.msra.mxu0 0.0
    %331 = vmatprep.subr.mxu0 0.0
    %332 = vmatpush1.msra.mxu0 0.0
    %333 = vmatprep.subr.mxu0 0.0
    %334 = vmatpush1.msra.mxu0 0.0
    %335 = vmatprep.subr.mxu0 0.0
    %336 = vmatpush1.msra.mxu0 0.0
    %337 = vmatprep.subr.mxu0 0.0
    %338 = vmatpush1.msra.mxu0 0.0
    %339 = vmatprep.subr.mxu0 0.0
    %340 = vmatpush1.msra.mxu0 0.0
    %341 = vmatprep.subr.mxu0 0.0
    %342 = vmatpush1.msra.mxu0 0.0
    %343 = vmatprep.subr.mxu0 0.0
    %344 = vmatpush1.msra.mxu0 0.0
    %345 = vmatprep.subr.mxu0 0.0
    %346 = vmatpush1.msra.mxu0 0.0
    %347 = vmatprep.subr.mxu0 0.0
    %348 = vmatpush1.msra.mxu0 0.0
    %349 = vmatprep.subr.mxu0 0.0
    %350 = vmatpush1.msra.mxu0 0.0
    %351 = vmatprep.subr.mxu0 0.0
    %352 = vmatpush1.msra.mxu0 0.0
    %353 = vmatprep.subr.mxu0 0.0
    %354 = vmatpush1.msra.mxu0 0.0
    %355 = vmatprep.subr.mxu0 0.0
    %356 = vmatpush1.msra.mxu0 0.0
    %357 = vmatprep.subr.mxu0 0.0
    %358 = vmatpush1.msra.mxu0 0.0
    %359 = vmatprep.subr.mxu0 0.0
    %360 = vmatpush1.msra.mxu0 0.0
    %361 = vmatprep.subr.mxu0 0.0
    %362 = vmatpush1.msra.mxu0 0.0
    %363 = vmatprep.subr.mxu0 0.0
    %364 = vmatpush1.msra.mxu0 0.0
    %365 = vmatprep.subr.mxu0 0.0
    %366 = vmatpush1.msra.mxu0 0.0
    %367 = vmatprep.subr.mxu0 0.0
    %368 = vmatpush1.msra.mxu0 0.0
    %369 = vmatprep.subr.mxu0 0.0
    %370 = vmatpush1.msra.mxu0 0.0
    %371 = vmatprep.mubr.f32.mxu0 0.0
    %372 = vmatmul.mubr.f32.gmra.mrb[0].mxu0 %v305
    %v373 = vpop.f32.mrb[0].mxu0
    %v374 = vadd.f32 0.0, %v373
    %v375 = vpop.f32.mrb[0].mxu0
    %376 = vdwg.mxu0
    %378 = vset.pattern.permute.xlu0 0
    %379 = vperm.xlu0 %378, %v293
    %v380 = vpop.permute.xlu0 %379
    %v381 = vlaneseq
    %v382 = vshrl.u32 %v381, 7
    %v383 = vsub.s32 %v226, %v382
    %v384 = vrot.slane %v380, %v383
    %v385 = vsel %vm304, %v384, 0
    %387 = vmatprep.subr.mxu0 0.0
    %388 = vmatpush1.msra.mxu0 %v295
    %389 = vmatprep.subr.mxu0 0.0
    %390 = vmatpush1.msra.mxu0 0.0
    %391 = vmatprep.subr.mxu0 0.0
    %392 = vmatpush1.msra.mxu0 0.0
    %393 = vmatprep.subr.mxu0 0.0
    %394 = vmatpush1.msra.mxu0 0.0
    %395 = vmatprep.subr.mxu0 0.0
    %396 = vmatpush1.msra.mxu0 0.0
    %397 = vmatprep.subr.mxu0 0.0
    %398 = vmatpush1.msra.mxu0 0.0
    %399 = vmatprep.subr.mxu0 0.0
    %400 = vmatpush1.msra.mxu0 0.0
    %401 = vmatprep.subr.mxu0 0.0
    %402 = vmatpush1.msra.mxu0 0.0
    %403 = vmatprep.subr.mxu0 0.0
    %404 = vmatpush1.msra.mxu0 0.0
    %405 = vmatprep.subr.mxu0 0.0
    %406 = vmatpush1.msra.mxu0 0.0
    %407 = vmatprep.subr.mxu0 0.0
    %408 = vmatpush1.msra.mxu0 0.0
    %409 = vmatprep.subr.mxu0 0.0
    %410 = vmatpush1.msra.mxu0 0.0
    %411 = vmatprep.subr.mxu0 0.0
    %412 = vmatpush1.msra.mxu0 0.0
    %413 = vmatprep.subr.mxu0 0.0
    %414 = vmatpush1.msra.mxu0 0.0
    %415 = vmatprep.subr.mxu0 0.0
    %416 = vmatpush1.msra.mxu0 0.0
    %417 = vmatprep.subr.mxu0 0.0
    %418 = vmatpush1.msra.mxu0 0.0
    %419 = vmatprep.subr.mxu0 0.0
    %420 = vmatpush1.msra.mxu0 0.0
    %421 = vmatprep.subr.mxu0 0.0
    %422 = vmatpush1.msra.mxu0 0.0
    %423 = vmatprep.subr.mxu0 0.0
    %424 = vmatpush1.msra.mxu0 0.0
    %425 = vmatprep.subr.mxu0 0.0
    %426 = vmatpush1.msra.mxu0 0.0
    %427 = vmatprep.subr.mxu0 0.0
    %428 = vmatpush1.msra.mxu0 0.0
    %429 = vmatprep.subr.mxu0 0.0
    %430 = vmatpush1.msra.mxu0 0.0
    %431 = vmatprep.subr.mxu0 0.0
    %432 = vmatpush1.msra.mxu0 0.0
    %433 = vmatprep.subr.mxu0 0.0
    %434 = vmatpush1.msra.mxu0 0.0
    %435 = vmatprep.subr.mxu0 0.0
    %436 = vmatpush1.msra.mxu0 0.0
    %437 = vmatprep.subr.mxu0 0.0
    %438 = vmatpush1.msra.mxu0 0.0
    %439 = vmatprep.subr.mxu0 0.0
    %440 = vmatpush1.msra.mxu0 0.0
    %441 = vmatprep.subr.mxu0 0.0
    %442 = vmatpush1.msra.mxu0 0.0
    %443 = vmatprep.subr.mxu0 0.0
    %444 = vmatpush1.msra.mxu0 0.0
    %445 = vmatprep.subr.mxu0 0.0
    %446 = vmatpush1.msra.mxu0 0.0
    %447 = vmatprep.subr.mxu0 0.0
    %448 = vmatpush1.msra.mxu0 0.0
    %449 = vmatprep.subr.mxu0 0.0
    %450 = vmatpush1.msra.mxu0 0.0
    %451 = vmatprep.mubr.f32.mxu0 0.0
    %452 = vmatmul.mubr.f32.gmra.mrb[0].mxu0 %v385
    %v453 = vpop.f32.mrb[0].mxu0
    %v454 = vadd.f32 0.0, %v453
    %v455 = vpop.f32.mrb[0].mxu0
    %456 = vdwg.mxu0
    %v459 = vrot.slane %v454, 7
    %v460 = vsel %vm235, %v459, %v374
    %vm462 = vcmask 254976
    %463 = vst.msk [vmem:[#allocation11] sm:$0x3] %vm462, %v460
    // Predicated region
    $region46: #{tpu_custom_call.1} parent=1 // pred_check
      _
    $region47: #{tpu_custom_call.1} parent=1 // pred_check_branch
      %465 = sbr.rel (0) target = $region49
    $region48: #{tpu_custom_call.1} parent=1 // pred_region
      %s467 = ssub.s32 32, 32
      %468 = vsyncadd [#allocation5], %s467
      %s470 = sshll.u32 [#allocation11], 4
      %s471 = int_to_ptr.vmem [resolvable:$true] %s470
      %473 = dma.vmem_to_hbm [thread:$0]  %s471, 32, %s7, [#allocation5]
    $region49: #{tpu_custom_call.1} parent=1 // pred_fallthru
      _
    // Predicated region
    $region50: #{tpu_custom_call.1} parent=1 // pred_check
      _
    $region51: #{tpu_custom_call.1} parent=1 // pred_check_branch
      %475 = sbr.rel (0) target = $region53
    $region52: #{tpu_custom_call.1} parent=1 // pred_region
      %476 = dma.done [#allocation5], 32
    $region53: #{tpu_custom_call.1} parent=1 // pred_fallthru
      _
    %477 = vsyncpa [#allocation4], 1
    %478 = vsyncpa [#allocation7], 1
    %479 = vsyncpa [#allocation10], 1
    %480 = vsyncpa [#allocation5], 1

</llo_original>
